<compile_context>
chip_gen: v7x
topology: tpu7x:2x2x1
jax: 0.10.0
libtpu: 0.0.40
codegen_flags: <defaults>
</compile_context>

<pallas_src>
import jax
import jax.numpy as jnp
from jax.experimental import pallas as pl
from jax.experimental.pallas import tpu as pltpu


# ---------------------------------------------------------------------------
# Parameter / Jacobian construction (glue, plain JAX — mirrors Ncv.__init__
# and Ncv.jacobian). The Jacobian is provided for API fidelity only; the
# forward pass below never materializes it.
# ---------------------------------------------------------------------------
def make_sa2():
    # Deterministic "parameter" init (nn.Parameter(sa2)). Not used in forward,
    # only by process_noise_cov (abstract in Ncv), but kept for fidelity.
    return jnp.asarray(1.5, dtype=jnp.float32)


def ncv_jacobian(dimension: int, dt: float, dtype=jnp.float32):
    """F = I with top-right (d//2, d//2) block = dt * I  (NCV transition)."""
    d = dimension
    F = jnp.eye(d, dtype=dtype)
    F = F.at[: d // 2, d // 2 :].set(dt * jnp.eye(d // 2, dtype=dtype))
    return F


# ---------------------------------------------------------------------------
# Pallas kernel: out = x + dt * shift(x)  (pure VPU, no F, no MXU)
# ---------------------------------------------------------------------------
def _ncv_forward_kernel(dt_ref, x_ref, o_ref):
    # dt_ref: (1,) f32 in SMEM.
    # x_ref / o_ref: (2, h) f32 in VMEM; row 0 = positions, row 1 = velocities.
    dt = dt_ref[0]
    pos = x_ref[0:1, :]          # (1, h)
    vel = x_ref[1:2, :]          # (1, h)
    o_ref[0:1, :] = pos + dt * vel
    o_ref[1:2, :] = vel


def ncv_forward(x, dt, sa2=None, do_normalization=True):
    """Ncv.forward: integrate native state x over interval dt (== F @ x)."""
    # do_normalization has no effect for this subclass (matches PyTorch).
    d = x.shape[0]
    assert d % 2 == 0, "NCV state dimension must be even (positions|velocities)"
    h = d // 2
    dt_val = jnp.asarray(dt, dtype=x.dtype)

    # Small-d fast path: launch + DMA overhead dwarfs an O(d) add; let XLA
    # fuse it into the caller (perf-review recommendation).
    if h < 128:
        return x.at[:h].add(dt_val * x[h:])

    # Pallas path: x viewed as (2, h) — lane-dense rows, O(d) HBM traffic.
    # (At realistic Kalman-filter sizes the whole state fits in VMEM in one
    #  block; no grid needed. x of many MiB would want a lane-tiled grid.)
    x2 = x.reshape(2, h)
    dt_arr = dt_val.reshape(1)

    out2 = pl.pallas_call(
        _ncv_forward_kernel,
        out_shape=jax.ShapeDtypeStruct((2, h), x.dtype),
        in_specs=[
            pl.BlockSpec(memory_space=pltpu.MemorySpace.SMEM),   # dt scalar
            pl.BlockSpec((2, h), lambda: (0, 0)),                # x (full block)
        ],
        out_specs=pl.BlockSpec((2, h), lambda: (0, 0)),
    )(dt_arr, x2)
    return out2.reshape(d)


# mean2pv / cov2pv are identity for Ncv.
def ncv_mean2pv(x):
    return x


def ncv_cov2pv(P):
    return P


# TODO(synk): process_noise_cov is @abstractmethod in Ncv (only defined in
# subclasses like NcvContinuous/NcvDiscrete), so it is not implemented here.
# TODO(synk): process_noise_dist needs pyro's MultivariateNormal; out of scope.


if __name__ == "__main__":
    key = jax.random.PRNGKey(0)
    dt = 0.1
    sa2 = make_sa2()

    # ---- Pallas path (d large enough to exercise the kernel) ---------------
    dimension = 256            # 128 positions + 128 velocities
    x = jax.random.normal(key, (dimension,), dtype=jnp.float32)

    out = ncv_forward(x, dt, sa2)
    out = jax.block_until_ready(out)

    h = dimension // 2
    ref = x.at[:h].add(dt * x[h:])
    assert out.shape == (dimension,)
    assert jnp.allclose(out, ref, atol=1e-6), (out, ref)
    # Cross-check against the dense Jacobian definition (F @ x).
    ref_dense = ncv_jacobian(dimension, dt) @ x
    assert jnp.allclose(out, ref_dense, atol=1e-5)

    # ---- small-d fast path (plain jnp, matches module's d=8-ish usage) -----
    x_small = jax.random.normal(jax.random.PRNGKey(1), (8,), dtype=jnp.float32)
    out_small = jax.block_until_ready(ncv_forward(x_small, dt, sa2))
    ref_small = x_small.at[:4].add(dt * x_small[4:])
    assert jnp.allclose(out_small, ref_small, atol=1e-6)

    print("KERNEL_OK")
</pallas_src>

<mosaic_0001>
module attributes {stable_mosaic.version = 11 : i64} {
  func.func @_ncv_forward_kernel(%arg0: memref<1xf32, #tpu.memory_space<smem>>, %arg1: memref<2x128xf32, #tpu.memory_space<vmem>>, %arg2: memref<2x128xf32, #tpu.memory_space<vmem>>) attributes {dimension_semantics = [], scalar_prefetch = 0 : i64, scratch_operands = 0 : i64, tpu.core_type = #tpu.core_type<tc>} {
    %c0 = arith.constant 0 : index
    %0 = memref.load %arg0[%c0] : memref<1xf32, #tpu.memory_space<smem>>
    %c0_0 = arith.constant 0 : index
    %c0_1 = arith.constant 0 : index
    %1 = vector.load %arg1[%c0_0, %c0_1] : memref<2x128xf32, #tpu.memory_space<vmem>>, vector<1x128xf32>
    %c1 = arith.constant 1 : index
    %c0_2 = arith.constant 0 : index
    %2 = vector.load %arg1[%c1, %c0_2] : memref<2x128xf32, #tpu.memory_space<vmem>>, vector<1x128xf32>
    %3 = vector.broadcast %0 : f32 to vector<1x128xf32>
    %4 = arith.mulf %3, %2 : vector<1x128xf32>
    %5 = arith.addf %1, %4 : vector<1x128xf32>
    %c0_3 = arith.constant 0 : index
    %c0_4 = arith.constant 0 : index
    %6 = vector.load %arg2[%c0_3, %c0_4] : memref<2x128xf32, #tpu.memory_space<vmem>>, vector<1x128xf32>
    tpu.vector_store %arg2[%c0_3, %c0_4], %5 {strides = array<i32>} : memref<2x128xf32, #tpu.memory_space<vmem>>, vector<1x128xf32>,
    %c1_5 = arith.constant 1 : index
    %c0_6 = arith.constant 0 : index
    %7 = vector.load %arg2[%c1_5, %c0_6] : memref<2x128xf32, #tpu.memory_space<vmem>>, vector<1x128xf32>
    tpu.vector_store %arg2[%c1_5, %c0_6], %2 {strides = array<i32>} : memref<2x128xf32, #tpu.memory_space<vmem>>, vector<1x128xf32>,
    return
  }
}

</mosaic_0001>

<llo_original>
// kernel: tpu_custom_call.1
$region0: #{tpu_custom_call.1}
  #allocation0 [shape = 'u32[]', space=smem, size = 0x4, offset = 0x4, fixed_abs, tag = 'smem constant byte address 0x4 - core index']
  #allocation1 [shape = 'u32[144,128]{1,0:T(1,128)}', space=vmem, size = 0x12000, scoped, tag = 'internal scratch']
  #allocation2 [shape = 'f32[1]{0:T(128)S(6)}', space=smem, size = 0x200, scoped, tag = 'scoped memory for tpu_custom_call.1']
  %s0 = inlined_call_operand.<no memory space> [shape: f32[1], index: 0, kind: input, shape index: {}]
  %s1 = inlined_call_operand.vmem [shape: f32[2,128], index: 1, kind: input, shape index: {}]
  %s2 = inlined_call_operand.hbm [shape: f32[2,128], index: 2, kind: output, shape index: {}]
  %s3 = sld [smem:[#allocation0]]
  $region18: #{tpu_custom_call.1} parent=0
    _
  %s5 = ssub.s32 1, %s3
  %s6 = scalar_select 0, %s5, %s3
  %7 = sst [smem:[#allocation2]] %s0
  $region1: #{tpu_custom_call.1} parent=0
    #allocation3 [shape = 'u8[1024]{0}', space=vmem, size = 0x400, scoped, tag = 'output window, operand 0, single buffered']
    #allocation4 [shape = 's32[1]{0}', space=sflag, size = 0x4, scoped, tag = 'scoped memory for tpu_custom_call.1']
    %8 = vsyncpa [#allocation4], 0
    // Predicated region
    $region2: #{tpu_custom_call.1} parent=1 // pred_check
      _
    $region3: #{tpu_custom_call.1} parent=1 // pred_check_branch
      %10 = sbr.rel (0) target = $region5
    $region4: #{tpu_custom_call.1} parent=1 // pred_region
      _
    $region5: #{tpu_custom_call.1} parent=1 // pred_fallthru
      _
    // Predicated region
    $region6: #{tpu_custom_call.1} parent=1 // pred_check
      _
    $region7: #{tpu_custom_call.1} parent=1 // pred_check_branch
      %12 = sbr.rel (0) target = $region9
    $region8: #{tpu_custom_call.1} parent=1 // pred_region
      _
    $region9: #{tpu_custom_call.1} parent=1 // pred_fallthru
      _
    %s13 = sld [smem:[#allocation2]]
    %v14 = vld [vmem:[%s1] sm:$0x1]
    %v15 = vld [vmem:[%s1 + $0x1] sm:$0x1]
    %v16 = vstv %s13
    %v17 = vmul.f32 %v16, %v15
    %v18 = vadd.f32 %v14, %v17
    %19 = vst [vmem:[#allocation3] sm:$0x1] %v18
    %20 = vst [vmem:[#allocation3 + $0x1] sm:$0x1] %v15
    // Predicated region
    $region10: #{tpu_custom_call.1} parent=1 // pred_check
      _
    $region11: #{tpu_custom_call.1} parent=1 // pred_check_branch
      %22 = sbr.rel (0) target = $region13
    $region12: #{tpu_custom_call.1} parent=1 // pred_region
      %s24 = ssub.s32 32, 32
      %25 = vsyncadd [#allocation4], %s24
      %s27 = sshll.u32 [#allocation3], 4
      %s28 = int_to_ptr.vmem [resolvable:$true] %s27
      %30 = dma.vmem_to_hbm [thread:$0]  %s28, 32, %s2, [#allocation4]
    $region13: #{tpu_custom_call.1} parent=1 // pred_fallthru
      _
    // Predicated region
    $region14: #{tpu_custom_call.1} parent=1 // pred_check
      _
    $region15: #{tpu_custom_call.1} parent=1 // pred_check_branch
      %32 = sbr.rel (0) target = $region17
    $region16: #{tpu_custom_call.1} parent=1 // pred_region
      %33 = dma.done [#allocation4], 32
    $region17: #{tpu_custom_call.1} parent=1 // pred_fallthru
      _
    %34 = vsyncpa [#allocation4], 1

</llo_original>
